<compile_context>
chip_gen: v7x
topology: tpu7x:2x2x1
jax: 0.10.0
libtpu: 0.0.40
codegen_flags: <defaults>
</compile_context>

<pallas_src>
import functools

import jax
import jax.numpy as jnp
from jax.experimental import pallas as pl
from jax.experimental.pallas import tpu as pltpu


def _round_up(x: int, m: int) -> int:
    return ((x + m - 1) // m) * m


def _vmem_cap_bytes() -> int:
    try:
        return int(pltpu.get_tpu_info().vmem_capacity_bytes)
    except Exception:
        return 64 * 1024 * 1024  # v7x floor; v5e/v6e have 128 MiB


def _temporal_loss_kernel(kstart_ref, kcount_ref, idx_ref, first_ref,
                          second_ref, warped_ref, loss_ref, acc_ref,
                          *, tile, hw_valid):
    """Per-(batch, output-tile) kernel.

    kstart_ref : (B, num_n) i32 SMEM  first needed source tile
    kcount_ref : (B, num_n) i32 SMEM  number of needed source tiles (>= 1)
    idx_ref    : (1, 1, T)  i32       flat source index per output pixel
    first_ref  : (num_k, C, T)        first frame, all source tiles (resident)
    second_ref : (1, C, T)            second frame, this output tile
    warped_ref : (1, C, T)            out: warped first frame tile
    loss_ref   : (1, 1, 1, 1) f32     out: partial |warped - second| sum
    acc_ref    : (C, T) f32           scratch accumulator
    """
    b = pl.program_id(0)
    n = pl.program_id(1)

    k0 = kstart_ref[b, n]
    kc = kcount_ref[b, n]

    idx = idx_ref[0]                                   # (1, T) int32

    acc_ref[...] = jnp.zeros_like(acc_ref)

    # Row iota of the (T_src, T_out) one-hot; hoisted out of the source loop.
    q = jax.lax.broadcasted_iota(jnp.int32, (tile, tile), 0)

    @pl.loop(0, kc)
    def _(t):
        kt = k0 + t
        src = first_ref[kt]                            # (C, T) source tile
        onehot = (q == (idx - kt * tile)).astype(src.dtype)   # (T, T)
        acc_ref[...] += jnp.dot(src, onehot,
                                preferred_element_type=jnp.float32)

    # Store warped in the output dtype, then compute the loss from the stored
    # value so loss == mean(|warped_out - second|) exactly.
    w = acc_ref[...].astype(warped_ref.dtype)
    warped_ref[0] = w

    lane = jax.lax.broadcasted_iota(jnp.int32, (1, tile), 1) + n * tile
    valid = (lane < hw_valid).astype(jnp.float32)      # mask padded pixels
    diff = jnp.abs(w.astype(jnp.float32) - second_ref[0].astype(jnp.float32))
    loss_ref[0, 0] = jnp.sum(diff * valid, keepdims=True)


def temporal_loss_forward(first_frame, second_frame, forward_flow, *, tile=1024):
    """Pallas equivalent of TemporalLoss.forward (data_w=True).

    first_frame, second_frame : (B, C, H, W)
    forward_flow              : (B, 2, H, W)  pixel-unit flow, pre -> cur frame
    returns (loss: f32 scalar, warped_first_frame: (B, C, H, W))
    """
    B, C, H, W = first_frame.shape
    HW = H * W

    T = min(_round_up(tile, 128), _round_up(HW, 128))   # lane tile (out & src)
    HW_pad = _round_up(HW, T)
    num_n = HW_pad // T                                  # output-pixel tiles
    num_k = HW_pad // T                                  # source-pixel tiles
    pad = HW_pad - HW

    # ---- coordinate chain (once, in XLA; also needed for source windows) ----
    # Matches the reference exactly: vgrid = grid - flow, normalized by
    # max(W-1,1)/max(H-1,1); grid_sample align_corners=False un-normalize;
    # border clamp; nearest via round-half-to-even (std::nearbyint).
    a_x = float(W) / float(max(W - 1, 1))
    a_y = float(H) / float(max(H - 1, 1))
    xx = jnp.tile(jnp.arange(W, dtype=jnp.float32), (H,)).reshape(1, HW)
    yy = jnp.repeat(jnp.arange(H, dtype=jnp.float32), W).reshape(1, HW)
    fx = forward_flow[:, 0].astype(jnp.float32).reshape(B, HW)
    fy = forward_flow[:, 1].astype(jnp.float32).reshape(B, HW)
    sx = jnp.clip(a_x * (xx - fx) - 0.5, 0.0, float(W - 1))
    sy = jnp.clip(a_y * (yy - fy) - 0.5, 0.0, float(H - 1))
    ix = jnp.round(sx).astype(jnp.int32)
    iy = jnp.round(sy).astype(jnp.int32)
    idx = iy * W + ix                                    # (B, HW), in [0, HW)

    if pad:
        # Edge-pad so padded lanes don't widen the last tile's source window.
        idx = jnp.concatenate(
            [idx, jnp.broadcast_to(idx[:, HW - 1:HW], (B, pad))], axis=1)

    # Per-(batch, output tile) contiguous source-tile window.
    k_of = (idx // T).reshape(B, num_n, T)
    k_start = k_of.min(axis=-1).astype(jnp.int32)        # (B, num_n)
    k_count = (k_of.max(axis=-1) - k_start + 1).astype(jnp.int32)

    # ---- data layout ---------------------------------------------------------
    first_flat = first_frame.reshape(B, C, HW)
    second_flat = second_frame.reshape(B, C, HW)
    if pad:
        first_flat = jnp.pad(first_flat, ((0, 0), (0, 0), (0, pad)))
        second_flat = jnp.pad(second_flat, ((0, 0), (0, 0), (0, pad)))
    # (B, num_k, C, T): source tiles on a leading axis so the kernel can pick
    # one with a dynamic scalar index.
    first_tiles = first_flat.reshape(B, C, num_k, T).transpose(0, 2, 1, 3)
    idx3 = idx.reshape(B, 1, HW_pad)

    # ---- VMEM budget ---------------------------------------------------------
    item = jnp.dtype(first_frame.dtype).itemsize
    c_pad = _round_up(C, 8)
    slab_bytes = 2 * num_k * c_pad * T * item            # double-buffered slab
    temp_bytes = (4 + 1 + item + 4) * T * T              # iota/cmp/one-hot temps
    small_bytes = 12 * c_pad * T * 4                     # acc/second/warped/idx
    need = slab_bytes + temp_bytes + small_bytes + (4 << 20)
    cap = _vmem_cap_bytes()
    vmem_limit = int(min(max(need, 32 << 20), max(cap - (8 << 20), 32 << 20)))

    kernel = functools.partial(_temporal_loss_kernel, tile=T, hw_valid=HW)

    warped_flat, partial = pl.pallas_call(
        kernel,
        out_shape=(
            jax.ShapeDtypeStruct((B, C, HW_pad), first_frame.dtype),
            jax.ShapeDtypeStruct((B, num_n, 1, 1), jnp.float32),
        ),
        grid_spec=pltpu.PrefetchScalarGridSpec(
            num_scalar_prefetch=2,              # k_start, k_count -> SMEM
            grid=(B, num_n),
            in_specs=[
                pl.BlockSpec((1, 1, T), lambda b, n, ks, kc: (b, 0, n)),   # idx
                pl.BlockSpec((None, num_k, C, T),
                             lambda b, n, ks, kc: (b, 0, 0, 0)),            # first slab
                pl.BlockSpec((1, C, T), lambda b, n, ks, kc: (b, 0, n)),    # second
            ],
            out_specs=[
                pl.BlockSpec((1, C, T), lambda b, n, ks, kc: (b, 0, n)),        # warped
                pl.BlockSpec((1, 1, 1, 1), lambda b, n, ks, kc: (b, n, 0, 0)),  # loss
            ],
            scratch_shapes=[pltpu.VMEM((C, T), jnp.float32)],
        ),
        compiler_params=pltpu.CompilerParams(
            # Both grid axes write disjoint output blocks -> megacore-shardable.
            dimension_semantics=("parallel", "parallel"),
            vmem_limit_bytes=vmem_limit,
        ),
    )(k_start, k_count, idx3, first_tiles, second_flat)

    loss = jnp.sum(partial) / jnp.float32(B * C * HW)
    warped = warped_flat[:, :, :HW].reshape(B, C, H, W)
    return loss, warped


if __name__ == "__main__":
    key = jax.random.PRNGKey(0)
    k1, k2, k3 = jax.random.split(key, 3)

    B, C, H, W = 2, 3, 16, 16
    first_frame = jax.random.uniform(k1, (B, C, H, W), dtype=jnp.float32)
    second_frame = jax.random.uniform(k2, (B, C, H, W), dtype=jnp.float32)
    # Flow in pixel units, small magnitudes (reference keeps most values small).
    forward_flow = 3.0 * jax.random.normal(k3, (B, 2, H, W), dtype=jnp.float32)

    loss, warped = jax.jit(temporal_loss_forward)(first_frame, second_frame,
                                                  forward_flow)
    jax.block_until_ready((loss, warped))

    # Pure-JAX reference of the same forward (grid_sample nearest / border /
    # align_corners=False + L1 mean) as a sanity check.
    def _ref(first, second, flow):
        b, c, h, w = first.shape
        ax = w / max(w - 1, 1)
        ay = h / max(h - 1, 1)
        xxr = jnp.tile(jnp.arange(w, dtype=jnp.float32), (h, 1))
        yyr = jnp.repeat(jnp.arange(h, dtype=jnp.float32)[:, None], w, axis=1)
        sxr = jnp.clip(ax * (xxr[None] - flow[:, 0]) - 0.5, 0.0, w - 1)
        syr = jnp.clip(ay * (yyr[None] - flow[:, 1]) - 0.5, 0.0, h - 1)
        idxr = (jnp.round(syr).astype(jnp.int32) * w
                + jnp.round(sxr).astype(jnp.int32)).reshape(b, 1, h * w)
        wr = jnp.take_along_axis(first.reshape(b, c, h * w),
                                 jnp.broadcast_to(idxr, (b, c, h * w)), axis=2)
        wr = wr.reshape(b, c, h, w)
        return jnp.mean(jnp.abs(wr - second)), wr

    ref_loss, ref_warped = _ref(first_frame, second_frame, forward_flow)

    assert warped.shape == (B, C, H, W)
    assert loss.shape == ()
    assert jnp.allclose(warped, ref_warped, atol=1e-6, rtol=1e-6)
    assert jnp.allclose(loss, ref_loss, atol=1e-6, rtol=1e-6)
    print("KERNEL_OK")
</pallas_src>

<mosaic_0001>
module attributes {stable_mosaic.version = 11 : i64} {
  func.func @_temporal_loss_kernel(%arg0: i32, %arg1: i32, %arg2: memref<2x1xi32, #tpu.memory_space<smem>>, %arg3: memref<2x1xi32, #tpu.memory_space<smem>>, %arg4: memref<1x1x256xi32, #tpu.memory_space<vmem>>, %arg5: memref<1x1x3x256xf32, #tpu.memory_space<vmem>>, %arg6: memref<1x3x256xf32, #tpu.memory_space<vmem>>, %arg7: memref<1x3x256xf32, #tpu.memory_space<vmem>>, %arg8: memref<1x1x1x1xf32, #tpu.memory_space<vmem>>, %arg9: memref<3x256xf32, #tpu.memory_space<vmem>>) attributes {dimension_semantics = [#tpu.dimension_semantics<parallel>, #tpu.dimension_semantics<parallel>], iteration_bounds = array<i64: 2, 1>, scalar_prefetch = 2 : i64, scratch_operands = 1 : i64, tpu.core_type = #tpu.core_type<tc>, window_params = [{transform_indices = @transform_0, window_bounds = array<i64: 1, 1, 256>}, {transform_indices = @transform_1, window_bounds = array<i64: 1, 1, 3, 256>}, {transform_indices = @transform_2, window_bounds = array<i64: 1, 3, 256>}, {transform_indices = @transform_3, window_bounds = array<i64: 1, 3, 256>}, {transform_indices = @transform_4, window_bounds = array<i64: 1, 1, 1, 1>}]} {
    %0 = arith.index_cast %arg0 : i32 to index
    %1 = arith.index_cast %arg1 : i32 to index
    %2 = memref.load %arg2[%0, %1] : memref<2x1xi32, #tpu.memory_space<smem>>
    %3 = arith.index_cast %arg0 : i32 to index
    %4 = arith.index_cast %arg1 : i32 to index
    %5 = memref.load %arg3[%3, %4] : memref<2x1xi32, #tpu.memory_space<smem>>
    %c0 = arith.constant 0 : index
    %c0_0 = arith.constant 0 : index
    %c0_1 = arith.constant 0 : index
    %6 = vector.load %arg4[%c0, %c0_0, %c0_1] : memref<1x1x256xi32, #tpu.memory_space<vmem>>, vector<1x1x256xi32>
    %7 = vector.shape_cast %6 : vector<1x1x256xi32> to vector<1x256xi32>
    %cst = arith.constant 0.000000e+00 : f32
    %8 = vector.broadcast %cst : f32 to vector<3x256xf32>
    %c0_2 = arith.constant 0 : index
    %c0_3 = arith.constant 0 : index
    %9 = vector.load %arg9[%c0_2, %c0_3] : memref<3x256xf32, #tpu.memory_space<vmem>>, vector<3x256xf32>
    tpu.vector_store %arg9[%c0_2, %c0_3], %8 {strides = array<i32>} : memref<3x256xf32, #tpu.memory_space<vmem>>, vector<3x256xf32>,
    %10 = tpu.iota {dimensions = array<i32: 0>} : vector<256x256xi32>
    %c0_i32 = arith.constant 0 : i32
    %11 = arith.subi %5, %c0_i32 : i32
    %c1_i32 = arith.constant 1 : i32
    %c1_i32_4 = arith.constant 1 : i32
    %12 = arith.subi %c1_i32, %c1_i32_4 : i32
    %13 = arith.addi %11, %12 : i32
    %c1_i32_5 = arith.constant 1 : i32
    %14 = arith.divsi %13, %c1_i32_5 : i32
    %c1_i32_6 = arith.constant 1 : i32
    %c0_i32_7 = arith.constant 0 : i32
    %c0_i32_8 = arith.constant 0 : i32
    %15 = arith.subi %14, %c0_i32_8 : i32
    %16 = arith.addi %c0_i32_8, %15 : i32
    %c1_i32_9 = arith.constant 1 : i32
    scf.for %arg10 = %c0_i32_8 to %16 step %c1_i32_9  : i32 {
      %43 = arith.muli %arg10, %c1_i32_6 : i32
      %44 = arith.addi %c0_i32_7, %43 : i32
      %45 = arith.addi %2, %44 : i32
      %c0_24 = arith.constant 0 : index
      %46 = arith.index_cast %45 : i32 to index
      %c0_25 = arith.constant 0 : index
      %c0_26 = arith.constant 0 : index
      %47 = vector.load %arg5[%c0_24, %46, %c0_25, %c0_26] : memref<1x1x3x256xf32, #tpu.memory_space<vmem>>, vector<1x1x3x256xf32>
      %48 = vector.shape_cast %47 : vector<1x1x3x256xf32> to vector<3x256xf32>
      %c256_i32_27 = arith.constant 256 : i32
      %49 = arith.muli %45, %c256_i32_27 : i32
      %50 = vector.broadcast %49 : i32 to vector<1x256xi32>
      %51 = arith.subi %7, %50 : vector<1x256xi32>
      %52 = vector.broadcast %51 : vector<1x256xi32> to vector<256x256xi32>
      %53 = arith.cmpi eq, %10, %52 : vector<256x256xi32>
      %54 = arith.extui %53 : vector<256x256xi1> to vector<256x256xi32>
      %55 = arith.sitofp %54 : vector<256x256xi32> to vector<256x256xf32>
      %c0_28 = arith.constant 0 : index
      %c0_29 = arith.constant 0 : index
      %56 = vector.load %arg9[%c0_28, %c0_29] : memref<3x256xf32, #tpu.memory_space<vmem>>, vector<3x256xf32>
      %cst_30 = arith.constant dense<0.000000e+00> : vector<3x256xf32>
      %57 = tpu.matmul %48, %55, %cst_30 {dimension_numbers = #tpu.dot_dimension_numbers<[1], [0], [0], [1], [0, 0, 1, 1], [], []>} : vector<3x256xf32>, vector<256x256xf32>, vector<3x256xf32> -> vector<3x256xf32>
      %58 = arith.addf %56, %57 : vector<3x256xf32>
      %c0_31 = arith.constant 0 : index
      %c0_32 = arith.constant 0 : index
      %59 = vector.load %arg9[%c0_31, %c0_32] : memref<3x256xf32, #tpu.memory_space<vmem>>, vector<3x256xf32>
      tpu.vector_store %arg9[%c0_31, %c0_32], %58 {strides = array<i32>} : memref<3x256xf32, #tpu.memory_space<vmem>>, vector<3x256xf32>,
    }
    %c0_10 = arith.constant 0 : index
    %c0_11 = arith.constant 0 : index
    %17 = vector.load %arg9[%c0_10, %c0_11] : memref<3x256xf32, #tpu.memory_space<vmem>>, vector<3x256xf32>
    %c0_12 = arith.constant 0 : index
    %c0_13 = arith.constant 0 : index
    %c0_14 = arith.constant 0 : index
    %18 = vector.load %arg7[%c0_12, %c0_13, %c0_14] : memref<1x3x256xf32, #tpu.memory_space<vmem>>, vector<1x3x256xf32>
    %19 = vector.shape_cast %18 : vector<1x3x256xf32> to vector<3x256xf32>
    %20 = vector.shape_cast %17 : vector<3x256xf32> to vector<1x3x256xf32>
    tpu.vector_store %arg7[%c0_12, %c0_13, %c0_14], %20 {strides = array<i32>} : memref<1x3x256xf32, #tpu.memory_space<vmem>>, vector<1x3x256xf32>,
    %21 = tpu.iota {dimensions = array<i32: 1>} : vector<1x256xi32>
    %c256_i32 = arith.constant 256 : i32
    %22 = arith.muli %arg1, %c256_i32 : i32
    %23 = vector.broadcast %22 : i32 to vector<1x256xi32>
    %24 = arith.addi %21, %23 : vector<1x256xi32>
    %c256_i32_15 = arith.constant 256 : i32
    %25 = vector.broadcast %c256_i32_15 : i32 to vector<1x256xi32>
    %26 = arith.cmpi slt, %24, %25 : vector<1x256xi32>
    %27 = arith.extui %26 : vector<1x256xi1> to vector<1x256xi32>
    %28 = arith.sitofp %27 : vector<1x256xi32> to vector<1x256xf32>
    %c0_16 = arith.constant 0 : index
    %c0_17 = arith.constant 0 : index
    %c0_18 = arith.constant 0 : index
    %29 = vector.load %arg6[%c0_16, %c0_17, %c0_18] : memref<1x3x256xf32, #tpu.memory_space<vmem>>, vector<1x3x256xf32>
    %30 = vector.shape_cast %29 : vector<1x3x256xf32> to vector<3x256xf32>
    %31 = arith.subf %17, %30 : vector<3x256xf32>
    %32 = math.absf %31 : vector<3x256xf32>
    %33 = vector.broadcast %28 : vector<1x256xf32> to vector<3x256xf32>
    %34 = arith.mulf %32, %33 : vector<3x256xf32>
    %35 = vector.shape_cast %34 : vector<3x256xf32> to vector<1x3x256xf32>
    %cst_19 = arith.constant dense<0.000000e+00> : vector<1xf32>
    %36 = vector.multi_reduction <add>, %35, %cst_19 [1, 2] : vector<1x3x256xf32> to vector<1xf32>
    %37 = vector.shape_cast %36 : vector<1xf32> to vector<1x1x1xf32>
    %38 = vector.extract %37[0, 0, 0] : f32 from vector<1x1x1xf32>
    %39 = vector.broadcast %38 : f32 to vector<1x1xf32>
    %c0_20 = arith.constant 0 : index
    %c0_21 = arith.constant 0 : index
    %c0_22 = arith.constant 0 : index
    %c0_23 = arith.constant 0 : index
    %40 = vector.load %arg8[%c0_20, %c0_21, %c0_22, %c0_23] : memref<1x1x1x1xf32, #tpu.memory_space<vmem>>, vector<1x1x1x1xf32>
    %41 = vector.shape_cast %40 : vector<1x1x1x1xf32> to vector<1x1xf32>
    %42 = vector.shape_cast %39 : vector<1x1xf32> to vector<1x1x1x1xf32>
    tpu.vector_store %arg8[%c0_20, %c0_21, %c0_22, %c0_23], %42 {strides = array<i32>} : memref<1x1x1x1xf32, #tpu.memory_space<vmem>>, vector<1x1x1x1xf32>,
    return
  }
  func.func @transform_0(%arg0: i32, %arg1: i32, %arg2: memref<2x1xi32, #tpu.memory_space<smem>>, %arg3: memref<2x1xi32, #tpu.memory_space<smem>>) -> (i32, i32, i32) {
    %c0_i32 = arith.constant 0 : i32
    %c0_i32_0 = arith.constant 0 : i32
    return %arg0, %c0_i32, %arg1 : i32, i32, i32
  }
  func.func @transform_1(%arg0: i32, %arg1: i32, %arg2: memref<2x1xi32, #tpu.memory_space<smem>>, %arg3: memref<2x1xi32, #tpu.memory_space<smem>>) -> (i32, i32, i32, i32) {
    %c0_i32 = arith.constant 0 : i32
    %c0_i32_0 = arith.constant 0 : i32
    %c0_i32_1 = arith.constant 0 : i32
    %c0_i32_2 = arith.constant 0 : i32
    return %arg0, %c0_i32, %c0_i32_0, %c0_i32_1 : i32, i32, i32, i32
  }
  func.func @transform_2(%arg0: i32, %arg1: i32, %arg2: memref<2x1xi32, #tpu.memory_space<smem>>, %arg3: memref<2x1xi32, #tpu.memory_space<smem>>) -> (i32, i32, i32) {
    %c0_i32 = arith.constant 0 : i32
    %c0_i32_0 = arith.constant 0 : i32
    return %arg0, %c0_i32, %arg1 : i32, i32, i32
  }
  func.func @transform_3(%arg0: i32, %arg1: i32, %arg2: memref<2x1xi32, #tpu.memory_space<smem>>, %arg3: memref<2x1xi32, #tpu.memory_space<smem>>) -> (i32, i32, i32) {
    %c0_i32 = arith.constant 0 : i32
    %c0_i32_0 = arith.constant 0 : i32
    return %arg0, %c0_i32, %arg1 : i32, i32, i32
  }
  func.func @transform_4(%arg0: i32, %arg1: i32, %arg2: memref<2x1xi32, #tpu.memory_space<smem>>, %arg3: memref<2x1xi32, #tpu.memory_space<smem>>) -> (i32, i32, i32, i32) {
    %c0_i32 = arith.constant 0 : i32
    %c0_i32_0 = arith.constant 0 : i32
    %c0_i32_1 = arith.constant 0 : i32
    return %arg0, %arg1, %c0_i32, %c0_i32_0 : i32, i32, i32, i32
  }
}

</mosaic_0001>

<llo_original>
// kernel: temporal_loss_forward.1
$region0: #{temporal_loss_forward.1}
  #allocation0 [shape = 'u32[]', space=smem, size = 0x4, offset = 0x4, fixed_abs, tag = 'smem constant byte address 0x4 - core index']
  #allocation1 [shape = 'u32[144,128]{1,0:T(1,128)}', space=vmem, size = 0x12000, scoped, tag = 'internal scratch']
  #allocation2 [shape = 'f32[3,256]{1,0:T(4,128)}', space=vmem, size = 0x1000, scoped, tag = 'scratch operand']
  #allocation3 [shape = 's32[1]{0}', space=sflag, size = 0x4, scoped, tag = 'scoped memory for temporal_loss_forward.1']
  #allocation4 [shape = 'u8[1024]{0}', space=smem, size = 0x400, scoped, tag = 'prefetched SMEM operand 0']
  #allocation5 [shape = 'u8[1024]{0}', space=smem, size = 0x400, scoped, tag = 'prefetched SMEM operand 1']
  %s0 = inlined_call_operand.vmem [shape: s32[2,1], index: 0, kind: input, shape index: {}]
  %s1 = inlined_call_operand.vmem [shape: s32[2,1], index: 1, kind: input, shape index: {}]
  %s2 = inlined_call_operand.vmem [shape: s32[2,1,256], index: 2, kind: input, shape index: {}]
  %s3 = inlined_call_operand.vmem [shape: f32[2,1,3,256], index: 3, kind: input, shape index: {}]
  %s4 = inlined_call_operand.vmem [shape: f32[2,3,256], index: 4, kind: input, shape index: {}]
  %s5 = inlined_call_operand.vmem [shape: f32[2,3,256], index: 5, kind: output, shape index: {0}]
  %s6 = inlined_call_operand.vmem [shape: f32[2,1,1,1], index: 6, kind: output, shape index: {1}]
  %7 = xla_tuple %s5, %s6
  %s8 = sld [smem:[#allocation0]]
  $region60: #{temporal_loss_forward.1} parent=0
    _
  %s10 = ssub.s32 1, %s8
  %s11 = scalar_select 0, %s10, %s8
  %s12 = sshll.u32 %s0, 4
  %s13 = int_to_ptr.vmem [resolvable:$true] %s12
  %15 = dma.vmem_to_smem %s13, 32, [#allocation4], [#allocation3]
  %s16 = sshll.u32 %s1, 4
  %s17 = int_to_ptr.vmem [resolvable:$true] %s16
  %19 = dma.vmem_to_smem %s17, 32, [#allocation5], [#allocation3]
  %20 = dma.done [#allocation3], 64
  %21 = sfence
  loop: start=0, step=1, limit=4
  $region2: #{temporal_loss_forward.1} parent=0 // loop_pre_header
    _
  $region3: #{temporal_loss_forward.1} parent=0 // loop_header
    %s23 = sphi 0, %s27
    %p24 = scmp.ge.s32.totalorder %s23, 4
    %s30 = sphi 0, %s42
    %s31 = sphi 0, %s38
    %s32 = sphi 0, %s30
    %s33 = sphi 0, %s31
    %s34 = sphi 0, %s32
    %s35 = sphi 0, %s33
    %s47 = sphi 0, %s49
    %s50 = sphi 0, %s47
    %s51 = sphi 0, %s50
    %s67 = sphi 0, %s51
    %s73 = sphi 0, %s75
    %s76 = sphi 0, %s73
    %s77 = sphi 0, %s76
    %s93 = sphi 0, %s77
    %s101 = sphi 0, %s103
    %s104 = sphi 0, %s101
    %s105 = sphi 0, %s104
    %s121 = sphi 0, %s105
    %s129 = sphi 0, %s131
    %s132 = sphi 0, %s129
    %s133 = sphi 0, %s132
    %s149 = sphi 0, %s133
    %s157 = sphi 0, %s159
    %s160 = sphi 0, %s157
    %s161 = sphi 0, %s160
    %s177 = sphi 0, %s161
  $region4: #{temporal_loss_forward.1} parent=0 // loop_header_branch
    %26 = sbr.rel (%p24) target = $region8
  $region5: #{temporal_loss_forward.1} parent=0 // loop_body
    %s28 = ssub.s32 %s23, 1
    %s29 = ssub.s32 %s23, 2
    %s36 = sadd.s32 1, %s31
    %p37 = scmp.ge.s32.totalorder %s36, 1
    %s38 = scalar_select %p37, 0, %s36
    %s39 = sadd.s32 1, %s30
    %s40 = scalar_select %p37, %s39, %s30
    %p41 = scmp.ge.s32.totalorder %s40, 2
    %s42 = scalar_select %p41, 0, %s40
    %s43 = ssub.s32 %s30, %s42
    %s44 = ssub.s32 %s31, %s38
    %s45 = sor.u32 %s43, %s44
    %p46 = scmp.eq.s32.totalorder %s45, 0
    %s48 = sadd.s32 %s47, 1
    %s49 = scalar_select %p46, %s47, %s48
    %p52 = pneg %p46
    %p53 = scmp.eq.s32.totalorder %s23, 1
    %p54 = por %p52, %p53
    %p55 = scmp.ne.s32.totalorder %s47, %s50
    %p56 = scmp.eq.s32.totalorder %s23, 0
    %p57 = por %p55, %p56
    %p58 = scmp.ne.s32.totalorder %s47, %s50
    %p59 = scmp.eq.s32.totalorder %s28, 1
    %p60 = por %p58, %p59
    %p61 = scmp.ne.s32.totalorder %s50, %s51
    %p62 = scmp.eq.s32.totalorder %s28, 0
    %p63 = por %p61, %p62
    %p64 = scmp.ne.s32.totalorder %s50, %s51
    %p65 = scmp.eq.s32.totalorder %s29, 1
    %p66 = por %p64, %p65
    %p68 = scmp.ne.s32.totalorder %s51, %s67
    %p69 = scmp.eq.s32.totalorder %s29, 0
    %p70 = por %p68, %p69
    %s71 = ssub.s32 %s30, %s42
    %p72 = scmp.eq.s32.totalorder %s71, 0
    %s74 = sadd.s32 %s73, 1
    %s75 = scalar_select %p72, %s73, %s74
    %p78 = pneg %p72
    %p79 = scmp.eq.s32.totalorder %s23, 1
    %p80 = por %p78, %p79
    %p81 = scmp.ne.s32.totalorder %s73, %s76
    %p82 = scmp.eq.s32.totalorder %s23, 0
    %p83 = por %p81, %p82
    %p84 = scmp.ne.s32.totalorder %s73, %s76
    %p85 = scmp.eq.s32.totalorder %s28, 1
    %p86 = por %p84, %p85
    %p87 = scmp.ne.s32.totalorder %s76, %s77
    %p88 = scmp.eq.s32.totalorder %s28, 0
    %p89 = por %p87, %p88
    %p90 = scmp.ne.s32.totalorder %s76, %s77
    %p91 = scmp.eq.s32.totalorder %s29, 1
    %p92 = por %p90, %p91
    %p94 = scmp.ne.s32.totalorder %s77, %s93
    %p95 = scmp.eq.s32.totalorder %s29, 0
    %p96 = por %p94, %p95
    %s97 = ssub.s32 %s30, %s42
    %s98 = ssub.s32 %s31, %s38
    %s99 = sor.u32 %s97, %s98
    %p100 = scmp.eq.s32.totalorder %s99, 0
    %s102 = sadd.s32 %s101, 1
    %s103 = scalar_select %p100, %s101, %s102
    %p106 = pneg %p100
    %p107 = scmp.eq.s32.totalorder %s23, 1
    %p108 = por %p106, %p107
    %p109 = scmp.ne.s32.totalorder %s101, %s104
    %p110 = scmp.eq.s32.totalorder %s23, 0
    %p111 = por %p109, %p110
    %p112 = scmp.ne.s32.totalorder %s101, %s104
    %p113 = scmp.eq.s32.totalorder %s28, 1
    %p114 = por %p112, %p113
    %p115 = scmp.ne.s32.totalorder %s104, %s105
    %p116 = scmp.eq.s32.totalorder %s28, 0
    %p117 = por %p115, %p116
    %p118 = scmp.ne.s32.totalorder %s104, %s105
    %p119 = scmp.eq.s32.totalorder %s29, 1
    %p120 = por %p118, %p119
    %p122 = scmp.ne.s32.totalorder %s105, %s121
    %p123 = scmp.eq.s32.totalorder %s29, 0
    %p124 = por %p122, %p123
    %s125 = ssub.s32 %s30, %s42
    %s126 = ssub.s32 %s31, %s38
    %s127 = sor.u32 %s125, %s126
    %p128 = scmp.eq.s32.totalorder %s127, 0
    %s130 = sadd.s32 %s129, 1
    %s131 = scalar_select %p128, %s129, %s130
    %p134 = pneg %p128
    %p135 = scmp.eq.s32.totalorder %s23, 1
    %p136 = por %p134, %p135
    %p137 = scmp.ne.s32.totalorder %s129, %s132
    %p138 = scmp.eq.s32.totalorder %s23, 0
    %p139 = por %p137, %p138
    %p140 = scmp.ne.s32.totalorder %s129, %s132
    %p141 = scmp.eq.s32.totalorder %s28, 1
    %p142 = por %p140, %p141
    %p143 = scmp.ne.s32.totalorder %s132, %s133
    %p144 = scmp.eq.s32.totalorder %s28, 0
    %p145 = por %p143, %p144
    %p146 = scmp.ne.s32.totalorder %s132, %s133
    %p147 = scmp.eq.s32.totalorder %s29, 1
    %p148 = por %p146, %p147
    %p150 = scmp.ne.s32.totalorder %s133, %s149
    %p151 = scmp.eq.s32.totalorder %s29, 0
    %p152 = por %p150, %p151
    %s153 = ssub.s32 %s30, %s42
    %s154 = ssub.s32 %s31, %s38
    %s155 = sor.u32 %s153, %s154
    %p156 = scmp.eq.s32.totalorder %s155, 0
    %s158 = sadd.s32 %s157, 1
    %s159 = scalar_select %p156, %s157, %s158
    %p162 = pneg %p156
    %p163 = scmp.eq.s32.totalorder %s23, 1
    %p164 = por %p162, %p163
    %p165 = scmp.ne.s32.totalorder %s157, %s160
    %p166 = scmp.eq.s32.totalorder %s23, 0
    %p167 = por %p165, %p166
    %p168 = scmp.ne.s32.totalorder %s157, %s160
    %p169 = scmp.eq.s32.totalorder %s28, 1
    %p170 = por %p168, %p169
    %p171 = scmp.ne.s32.totalorder %s160, %s161
    %p172 = scmp.eq.s32.totalorder %s28, 0
    %p173 = por %p171, %p172
    %p174 = scmp.ne.s32.totalorder %s160, %s161
    %p175 = scmp.eq.s32.totalorder %s29, 1
    %p176 = por %p174, %p175
    %p178 = scmp.ne.s32.totalorder %s161, %s177
    %p179 = scmp.eq.s32.totalorder %s29, 0
    %p180 = por %p178, %p179
    %p181 = scmp.le.s32.totalorder 1, %s23
    %p182 = scmp.lt.s32.totalorder %s23, 3
    %p183 = pnand %p181, %p182
    %p184 = pneg %p183
    // Predicated region
    $region9: #{temporal_loss_forward.1} parent=5 // pred_check
      _
    $region10: #{temporal_loss_forward.1} parent=5 // pred_check_branch
      %186 = sbr.rel (%p183) target = $region12
    $region11: #{temporal_loss_forward.1} parent=5 // pred_region
      %s187 = ssub.s32 %s23, 1
    $region12: #{temporal_loss_forward.1} parent=5 // pred_fallthru
      _
    %p188 = scmp.lt.s32.totalorder %s23, 2
    // Predicated region
    $region13: #{temporal_loss_forward.1} parent=5 // pred_check
      %p189 = pneg %p188
    $region14: #{temporal_loss_forward.1} parent=5 // pred_check_branch
      %191 = sbr.rel (%p189) target = $region16
    $region15: #{temporal_loss_forward.1} parent=5 // pred_region
      // Predicated region
      $region17: #{temporal_loss_forward.1} parent=15 // pred_check
        %p192 = pneg %p57
      $region18: #{temporal_loss_forward.1} parent=15 // pred_check_branch
        %194 = sbr.rel (%p192) target = $region20
      $region19: #{temporal_loss_forward.1} parent=15 // pred_region
        %s195 = smul.u32 2, %s31
        %p196 = scmp.lt.s32.totalorder %s30, 1
        %s197 = scalar_select %p196, %s30, 1
        %p198 = scmp.lt.s32.totalorder %s195, 1
        %s199 = scalar_select %p198, %s195, 1
        %s200 = smul.addr %s197, 2
        %s201 = sadd.s32 %s199, %s200
        %s202 = scalar_lea.vmem %s2, %s201
        %s203 = smul.u32 2, %s31
      $region20: #{temporal_loss_forward.1} parent=15 // pred_fallthru
        _
      // Predicated region
      $region21: #{temporal_loss_forward.1} parent=15 // pred_check
        %p204 = pneg %p83
      $region22: #{temporal_loss_forward.1} parent=15 // pred_check_branch
        %206 = sbr.rel (%p204) target = $region24
      $region23: #{temporal_loss_forward.1} parent=15 // pred_region
        %p207 = scmp.lt.s32.totalorder %s30, 1
        %s208 = scalar_select %p207, %s30, 1
        %s209 = smul.addr %s208, 2
        %s210 = smul.addr %s209, 4
        %s211 = scalar_lea.vmem %s3, %s210
      $region24: #{temporal_loss_forward.1} parent=15 // pred_fallthru
        _
      // Predicated region
      $region25: #{temporal_loss_forward.1} parent=15 // pred_check
        %p212 = pneg %p111
      $region26: #{temporal_loss_forward.1} parent=15 // pred_check_branch
        %214 = sbr.rel (%p212) target = $region28
      $region27: #{temporal_loss_forward.1} parent=15 // pred_region
        %s215 = smul.u32 2, %s31
        %p216 = scmp.lt.s32.totalorder %s30, 1
        %s217 = scalar_select %p216, %s30, 1
        %p218 = scmp.lt.s32.totalorder %s215, 1
        %s219 = scalar_select %p218, %s215, 1
        %s220 = smul.addr %s217, 2
        %s221 = sadd.s32 %s219, %s220
        %s222 = smul.addr %s221, 4
        %s223 = scalar_lea.vmem %s4, %s222
        %s224 = smul.u32 2, %s31
      $region28: #{temporal_loss_forward.1} parent=15 // pred_fallthru
        _
    $region16: #{temporal_loss_forward.1} parent=5 // pred_fallthru
      _
    %p225 = scmp.le.s32.totalorder 1, %s23
    %p226 = scmp.lt.s32.totalorder %s23, 3
    %p227 = pnand %p225, %p226
    %p228 = pneg %p227
    // Predicated region
    $region29: #{temporal_loss_forward.1} parent=5 // pred_check
      _
    $region30: #{temporal_loss_forward.1} parent=5 // pred_check_branch
      %230 = sbr.rel (%p227) target = $region32
    $region31: #{temporal_loss_forward.1} parent=5 // pred_region
      %s231 = ssub.s32 %s23, 1
      %s232 = smul.u32 2, %s33
      %p233 = scmp.lt.s32.totalorder %s32, 1
      %s234 = scalar_select %p233, %s32, 1
      %p235 = scmp.lt.s32.totalorder %s232, 1
      %s236 = scalar_select %p235, %s232, 1
      %s237 = smul.addr %s234, 2
      %s238 = sadd.s32 %s236, %s237
      %s239 = scalar_lea.vmem %s2, %s238
      %p240 = pneg %p63
      %p241 = pneg %p60
      %p242 = scmp.lt.s32.totalorder %s32, 1
      %s243 = scalar_select %p242, %s32, 1
      %s244 = smul.addr %s243, 2
      %s245 = smul.addr %s244, 4
      %s246 = scalar_lea.vmem %s3, %s245
      %p247 = pneg %p89
      %p248 = pneg %p86
      %s249 = smul.u32 2, %s33
      %p250 = scmp.lt.s32.totalorder %s32, 1
      %s251 = scalar_select %p250, %s32, 1
      %p252 = scmp.lt.s32.totalorder %s249, 1
      %s253 = scalar_select %p252, %s249, 1
      %s254 = smul.addr %s251, 2
      %s255 = sadd.s32 %s253, %s254
      %s256 = smul.addr %s255, 4
      %s257 = scalar_lea.vmem %s4, %s256
      %p258 = pneg %p117
      %p259 = pneg %p114
      %p260 = pneg %p145
      %p261 = pneg %p142
      %s262 = smul.u32 2, %s33
      %p263 = scmp.lt.s32.totalorder %s32, 1
      %s264 = scalar_select %p263, %s32, 1
      %p265 = scmp.lt.s32.totalorder %s262, 1
      %s266 = scalar_select %p265, %s262, 1
      %s267 = smul.addr %s264, 2
      %s268 = sadd.s32 %s266, %s267
      %s269 = smul.addr %s268, 4
      %s270 = scalar_lea.vmem %s5, %s269
      %p271 = pneg %p173
      %p272 = pneg %p170
      %p273 = scmp.lt.s32.totalorder %s32, 1
      %s274 = scalar_select %p273, %s32, 1
      %p275 = scmp.lt.s32.totalorder %s33, 0
      %s276 = scalar_select %p275, %s33, 0
      %s277 = sadd.s32 %s276, %s274
      %s278 = scalar_lea.vmem %s6, %s277
      %s279 = smul.u32 2, %s33
      %p280 = scmp.lt.s32.totalorder %s32, 1
      %s281 = scalar_select %p280, %s32, 1
      %p282 = scmp.lt.s32.totalorder %s279, 1
      %s283 = scalar_select %p282, %s279, 1
      %s284 = smul.addr %s281, 2
      %s285 = sadd.s32 %s283, %s284
      %s286 = scalar_lea.vmem %s2, %s285
      %s287 = smul.u32 2, %s33
      %p288 = scmp.lt.s32.totalorder %s32, 1
      %s289 = scalar_select %p288, %s32, 1
      %s290 = smul.addr %s289, 2
      %s291 = smul.addr %s290, 4
      %s292 = scalar_lea.vmem %s3, %s291
      %s293 = smul.u32 2, %s33
      %p294 = scmp.lt.s32.totalorder %s32, 1
      %s295 = scalar_select %p294, %s32, 1
      %p296 = scmp.lt.s32.totalorder %s293, 1
      %s297 = scalar_select %p296, %s293, 1
      %s298 = smul.addr %s295, 2
      %s299 = sadd.s32 %s297, %s298
      %s300 = smul.addr %s299, 4
      %s301 = scalar_lea.vmem %s4, %s300
      %s302 = smul.u32 2, %s33
      %s303 = smul.u32 2, %s33
      %p304 = scmp.lt.s32.totalorder %s32, 1
      %s305 = scalar_select %p304, %s32, 1
      %p306 = scmp.lt.s32.totalorder %s303, 1
      %s307 = scalar_select %p306, %s303, 1
      %s308 = smul.addr %s305, 2
      %s309 = sadd.s32 %s307, %s308
      %s310 = smul.addr %s309, 4
      %s311 = scalar_lea.vmem %s5, %s310
      %s312 = smul.u32 2, %s33
      %p313 = scmp.lt.s32.totalorder %s32, 1
      %s314 = scalar_select %p313, %s32, 1
      %p315 = scmp.lt.s32.totalorder %s33, 0
      %s316 = scalar_select %p315, %s33, 0
      %s317 = sadd.s32 %s316, %s314
      %s318 = scalar_lea.vmem %s6, %s317
      %s319 = sshra.s32 %s33, 7
      %s320 = sand.u32 %s33, 127
      %s321 = sadd.s32 %s319, %s32
      %s322 = smul.u32 %s321, 128
      %s323 = sshra.s32 %s33, 7
      %s324 = sand.u32 %s33, 127
      %s325 = sadd.s32 %s322, %s324
      %s326 = sld [smem:[#allocation4 + %s325]]
      %s327 = sld [smem:[#allocation5 + %s325]]
      %v328 = vld [vmem:[%s286] sm:$0x3]
      %329 = vst [vmem:[#allocation2] sm:$0x77] 0.0
      %v330 = vlaneseq
      %v331 = vshrl.u32 %v330, 7
      %v332 = vadd.s32 %v331, 8
      %v333 = vadd.s32 %v331, 16
      %v334 = vadd.s32 %v331, 24
      %v335 = vadd.s32 %v331, 32
      %v336 = vadd.s32 %v331, 40
      %v337 = vadd.s32 %v331, 48
      %v338 = vadd.s32 %v331, 56
      %v339 = vadd.s32 %v331, 64
      %v340 = vadd.s32 %v331, 72
      %v341 = vadd.s32 %v331, 80
      %v342 = vadd.s32 %v331, 88
      %v343 = vadd.s32 %v331, 96
      %v344 = vadd.s32 %v331, 104
      %v345 = vadd.s32 %v331, 112
      %v346 = vadd.s32 %v331, 120
      %v347 = vadd.s32 %v331, 128
      %v348 = vadd.s32 %v331, 136
      %v349 = vadd.s32 %v331, 144
      %v350 = vadd.s32 %v331, 152
      %v351 = vadd.s32 %v331, 160
      %v352 = vadd.s32 %v331, 168
      %v353 = vadd.s32 %v331, 176
      %v354 = vadd.s32 %v331, 184
      %v355 = vadd.s32 %v331, 192
      %v356 = vadd.s32 %v331, 200
      %v357 = vadd.s32 %v331, 208
      %v358 = vadd.s32 %v331, 216
      %v359 = vadd.s32 %v331, 224
      %v360 = vadd.s32 %v331, 232
      %v361 = vadd.s32 %v331, 240
      %v362 = vadd.s32 %v331, 248
      // While loop
      $region33: #{temporal_loss_forward.1} parent=31 // loop_pre_header
        _
      $region34: #{temporal_loss_forward.1} parent=31 // loop_header
        %s364 = sphi 0, %s366
        %p365 = scmp.ge.s32.totalorder %s364, %s327
      $region35: #{temporal_loss_forward.1} parent=31 // loop_header_branch
        %368 = sbr.rel (%p365) target = $region39
      $region36: #{temporal_loss_forward.1} parent=31 // loop_body
        %s369 = sadd.s32 %s326, %s364
        %s370 = smul.u32 %s369, 2
        %s371 = smul.addr %s370, 4
        %s372 = scalar_lea.vmem %s292, %s371
        %v373 = vld [vmem:[%s372] sm:$0x77]
        %s374 = smul.u32 %s369, 256
        %v375 = vstv %s374
        %v376 = vsub.s32 %v328, %v375
        %v377 = vlaneseq
        %v378 = vshrl.u32 %v377, 7
        %v379 = vsub.s32 0, %v378
        %v380 = vrot.slane %v376, %v379
        %v381 = vlaneseq
        %v382 = vshrl.u32 %v381, 7
        %v383 = vsub.s32 1, %v382
        %v384 = vrot.slane %v376, %v383
        %vm385 = vcmp.eq.s32.totalorder %v331, %v380
        %vm386 = vcmp.eq.s32.totalorder %v331, %v384
        %vm387 = vcmp.eq.s32.totalorder %v332, %v380
        %vm388 = vcmp.eq.s32.totalorder %v332, %v384
        %vm389 = vcmp.eq.s32.totalorder %v333, %v380
        %vm390 = vcmp.eq.s32.totalorder %v333, %v384
        %vm391 = vcmp.eq.s32.totalorder %v334, %v380
        %vm392 = vcmp.eq.s32.totalorder %v334, %v384
        %vm393 = vcmp.eq.s32.totalorder %v335, %v380
        %vm394 = vcmp.eq.s32.totalorder %v335, %v384
        %vm395 = vcmp.eq.s32.totalorder %v336, %v380
        %vm396 = vcmp.eq.s32.totalorder %v336, %v384
        %vm397 = vcmp.eq.s32.totalorder %v337, %v380
        %vm398 = vcmp.eq.s32.totalorder %v337, %v384
        %vm399 = vcmp.eq.s32.totalorder %v338, %v380
        %vm400 = vcmp.eq.s32.totalorder %v338, %v384
        %vm401 = vcmp.eq.s32.totalorder %v339, %v380
        %vm402 = vcmp.eq.s32.totalorder %v339, %v384
        %vm403 = vcmp.eq.s32.totalorder %v340, %v380
        %vm404 = vcmp.eq.s32.totalorder %v340, %v384
        %vm405 = vcmp.eq.s32.totalorder %v341, %v380
        %vm406 = vcmp.eq.s32.totalorder %v341, %v384
        %vm407 = vcmp.eq.s32.totalorder %v342, %v380
        %vm408 = vcmp.eq.s32.totalorder %v342, %v384
        %vm409 = vcmp.eq.s32.totalorder %v343, %v380
        %vm410 = vcmp.eq.s32.totalorder %v343, %v384
        %vm411 = vcmp.eq.s32.totalorder %v344, %v380
        %vm412 = vcmp.eq.s32.totalorder %v344, %v384
        %vm413 = vcmp.eq.s32.totalorder %v345, %v380
        %vm414 = vcmp.eq.s32.totalorder %v345, %v384
        %vm415 = vcmp.eq.s32.totalorder %v346, %v380
        %vm416 = vcmp.eq.s32.totalorder %v346, %v384
        %vm417 = vcmp.eq.s32.totalorder %v347, %v380
        %vm418 = vcmp.eq.s32.totalorder %v347, %v384
        %vm419 = vcmp.eq.s32.totalorder %v348, %v380
        %vm420 = vcmp.eq.s32.totalorder %v348, %v384
        %vm421 = vcmp.eq.s32.totalorder %v349, %v380
        %vm422 = vcmp.eq.s32.totalorder %v349, %v384
        %vm423 = vcmp.eq.s32.totalorder %v350, %v380
        %vm424 = vcmp.eq.s32.totalorder %v350, %v384
        %vm425 = vcmp.eq.s32.totalorder %v351, %v380
        %vm426 = vcmp.eq.s32.totalorder %v351, %v384
        %vm427 = vcmp.eq.s32.totalorder %v352, %v380
        %vm428 = vcmp.eq.s32.totalorder %v352, %v384
        %vm429 = vcmp.eq.s32.totalorder %v353, %v380
        %vm430 = vcmp.eq.s32.totalorder %v353, %v384
        %vm431 = vcmp.eq.s32.totalorder %v354, %v380
        %vm432 = vcmp.eq.s32.totalorder %v354, %v384
        %vm433 = vcmp.eq.s32.totalorder %v355, %v380
        %vm434 = vcmp.eq.s32.totalorder %v355, %v384
        %vm435 = vcmp.eq.s32.totalorder %v356, %v380
        %vm436 = vcmp.eq.s32.totalorder %v356, %v384
        %vm437 = vcmp.eq.s32.totalorder %v357, %v380
        %vm438 = vcmp.eq.s32.totalorder %v357, %v384
        %vm439 = vcmp.eq.s32.totalorder %v358, %v380
        %vm440 = vcmp.eq.s32.totalorder %v358, %v384
        %vm441 = vcmp.eq.s32.totalorder %v359, %v380
        %vm442 = vcmp.eq.s32.totalorder %v359, %v384
        %vm443 = vcmp.eq.s32.totalorder %v360, %v380
        %vm444 = vcmp.eq.s32.totalorder %v360, %v384
        %vm445 = vcmp.eq.s32.totalorder %v361, %v380
        %vm446 = vcmp.eq.s32.totalorder %v361, %v384
        %vm447 = vcmp.eq.s32.totalorder %v362, %v380
        %vm448 = vcmp.eq.s32.totalorder %v362, %v384
        %v449 = vsel %vm385, 1, 0
        %v450 = vsel %vm386, 1, 0
        %v451 = vsel %vm387, 1, 0
        %v452 = vsel %vm388, 1, 0
        %v453 = vsel %vm389, 1, 0
        %v454 = vsel %vm390, 1, 0
        %v455 = vsel %vm391, 1, 0
        %v456 = vsel %vm392, 1, 0
        %v457 = vsel %vm393, 1, 0
        %v458 = vsel %vm394, 1, 0
        %v459 = vsel %vm395, 1, 0
        %v460 = vsel %vm396, 1, 0
        %v461 = vsel %vm397, 1, 0
        %v462 = vsel %vm398, 1, 0
        %v463 = vsel %vm399, 1, 0
        %v464 = vsel %vm400, 1, 0
        %v465 = vsel %vm401, 1, 0
        %v466 = vsel %vm402, 1, 0
        %v467 = vsel %vm403, 1, 0
        %v468 = vsel %vm404, 1, 0
        %v469 = vsel %vm405, 1, 0
        %v470 = vsel %vm406, 1, 0
        %v471 = vsel %vm407, 1, 0
        %v472 = vsel %vm408, 1, 0
        %v473 = vsel %vm409, 1, 0
        %v474 = vsel %vm410, 1, 0
        %v475 = vsel %vm411, 1, 0
        %v476 = vsel %vm412, 1, 0
        %v477 = vsel %vm413, 1, 0
        %v478 = vsel %vm414, 1, 0
        %v479 = vsel %vm415, 1, 0
        %v480 = vsel %vm416, 1, 0
        %v481 = vsel %vm417, 1, 0
        %v482 = vsel %vm418, 1, 0
        %v483 = vsel %vm419, 1, 0
        %v484 = vsel %vm420, 1, 0
        %v485 = vsel %vm421, 1, 0
        %v486 = vsel %vm422, 1, 0
        %v487 = vsel %vm423, 1, 0
        %v488 = vsel %vm424, 1, 0
        %v489 = vsel %vm425, 1, 0
        %v490 = vsel %vm426, 1, 0
        %v491 = vsel %vm427, 1, 0
        %v492 = vsel %vm428, 1, 0
        %v493 = vsel %vm429, 1, 0
        %v494 = vsel %vm430, 1, 0
        %v495 = vsel %vm431, 1, 0
        %v496 = vsel %vm432, 1, 0
        %v497 = vsel %vm433, 1, 0
        %v498 = vsel %vm434, 1, 0
        %v499 = vsel %vm435, 1, 0
        %v500 = vsel %vm436, 1, 0
        %v501 = vsel %vm437, 1, 0
        %v502 = vsel %vm438, 1, 0
        %v503 = vsel %vm439, 1, 0
        %v504 = vsel %vm440, 1, 0
        %v505 = vsel %vm441, 1, 0
        %v506 = vsel %vm442, 1, 0
        %v507 = vsel %vm443, 1, 0
        %v508 = vsel %vm444, 1, 0
        %v509 = vsel %vm445, 1, 0
        %v510 = vsel %vm446, 1, 0
        %v511 = vsel %vm447, 1, 0
        %v512 = vsel %vm448, 1, 0
        %v513 = vcvt.s32.f32 %v449
        %v514 = vcvt.s32.f32 %v450
        %v515 = vcvt.s32.f32 %v451
        %v516 = vcvt.s32.f32 %v452
        %v517 = vcvt.s32.f32 %v453
        %v518 = vcvt.s32.f32 %v454
        %v519 = vcvt.s32.f32 %v455
        %v520 = vcvt.s32.f32 %v456
        %v521 = vcvt.s32.f32 %v457
        %v522 = vcvt.s32.f32 %v458
        %v523 = vcvt.s32.f32 %v459
        %v524 = vcvt.s32.f32 %v460
        %v525 = vcvt.s32.f32 %v461
        %v526 = vcvt.s32.f32 %v462
        %v527 = vcvt.s32.f32 %v463
        %v528 = vcvt.s32.f32 %v464
        %v529 = vcvt.s32.f32 %v465
        %v530 = vcvt.s32.f32 %v466
        %v531 = vcvt.s32.f32 %v467
        %v532 = vcvt.s32.f32 %v468
        %v533 = vcvt.s32.f32 %v469
        %v534 = vcvt.s32.f32 %v470
        %v535 = vcvt.s32.f32 %v471
        %v536 = vcvt.s32.f32 %v472
        %v537 = vcvt.s32.f32 %v473
        %v538 = vcvt.s32.f32 %v474
        %v539 = vcvt.s32.f32 %v475
        %v540 = vcvt.s32.f32 %v476
        %v541 = vcvt.s32.f32 %v477
        %v542 = vcvt.s32.f32 %v478
        %v543 = vcvt.s32.f32 %v479
        %v544 = vcvt.s32.f32 %v480
        %v545 = vcvt.s32.f32 %v481
        %v546 = vcvt.s32.f32 %v482
        %v547 = vcvt.s32.f32 %v483
        %v548 = vcvt.s32.f32 %v484
        %v549 = vcvt.s32.f32 %v485
        %v550 = vcvt.s32.f32 %v486
        %v551 = vcvt.s32.f32 %v487
        %v552 = vcvt.s32.f32 %v488
        %v553 = vcvt.s32.f32 %v489
        %v554 = vcvt.s32.f32 %v490
        %v555 = vcvt.s32.f32 %v491
        %v556 = vcvt.s32.f32 %v492
        %v557 = vcvt.s32.f32 %v493
        %v558 = vcvt.s32.f32 %v494
        %v559 = vcvt.s32.f32 %v495
        %v560 = vcvt.s32.f32 %v496
        %v561 = vcvt.s32.f32 %v497
        %v562 = vcvt.s32.f32 %v498
        %v563 = vcvt.s32.f32 %v499
        %v564 = vcvt.s32.f32 %v500
        %v565 = vcvt.s32.f32 %v501
        %v566 = vcvt.s32.f32 %v502
        %v567 = vcvt.s32.f32 %v503
        %v568 = vcvt.s32.f32 %v504
        %v569 = vcvt.s32.f32 %v505
        %v570 = vcvt.s32.f32 %v506
        %v571 = vcvt.s32.f32 %v507
        %v572 = vcvt.s32.f32 %v508
        %v573 = vcvt.s32.f32 %v509
        %v574 = vcvt.s32.f32 %v510
        %v575 = vcvt.s32.f32 %v511
        %v576 = vcvt.s32.f32 %v512
        %v577 = vld [vmem:[#allocation2] sm:$0x77]
        %v579 = vcombine.high %v373, %v373
        %581 = vmatprep.subr.mxu0 %v514
        %582 = vmatpush1.msra.mxu0 %v513
        %583 = vmatprep.subr.mxu0 %v516
        %584 = vmatpush1.msra.mxu0 %v515
        %585 = vmatprep.subr.mxu0 %v518
        %586 = vmatpush1.msra.mxu0 %v517
        %587 = vmatprep.subr.mxu0 %v520
        %588 = vmatpush1.msra.mxu0 %v519
        %589 = vmatprep.subr.mxu0 %v522
        %590 = vmatpush1.msra.mxu0 %v521
        %591 = vmatprep.subr.mxu0 %v524
        %592 = vmatpush1.msra.mxu0 %v523
        %593 = vmatprep.subr.mxu0 %v526
        %594 = vmatpush1.msra.mxu0 %v525
        %595 = vmatprep.subr.mxu0 %v528
        %596 = vmatpush1.msra.mxu0 %v527
        %597 = vmatprep.subr.mxu0 %v530
        %598 = vmatpush1.msra.mxu0 %v529
        %599 = vmatprep.subr.mxu0 %v532
        %600 = vmatpush1.msra.mxu0 %v531
        %601 = vmatprep.subr.mxu0 %v534
        %602 = vmatpush1.msra.mxu0 %v533
        %603 = vmatprep.subr.mxu0 %v536
        %604 = vmatpush1.msra.mxu0 %v535
        %605 = vmatprep.subr.mxu0 %v538
        %606 = vmatpush1.msra.mxu0 %v537
        %607 = vmatprep.subr.mxu0 %v540
        %608 = vmatpush1.msra.mxu0 %v539
        %609 = vmatprep.subr.mxu0 %v542
        %610 = vmatpush1.msra.mxu0 %v541
        %611 = vmatprep.subr.mxu0 %v544
        %612 = vmatpush1.msra.mxu0 %v543
        %613 = vmatprep.subr.mxu0 %v546
        %614 = vmatpush1.msra.mxu0 %v545
        %615 = vmatprep.subr.mxu0 %v548
        %616 = vmatpush1.msra.mxu0 %v547
        %617 = vmatprep.subr.mxu0 %v550
        %618 = vmatpush1.msra.mxu0 %v549
        %619 = vmatprep.subr.mxu0 %v552
        %620 = vmatpush1.msra.mxu0 %v551
        %621 = vmatprep.subr.mxu0 %v554
        %622 = vmatpush1.msra.mxu0 %v553
        %623 = vmatprep.subr.mxu0 %v556
        %624 = vmatpush1.msra.mxu0 %v555
        %625 = vmatprep.subr.mxu0 %v558
        %626 = vmatpush1.msra.mxu0 %v557
        %627 = vmatprep.subr.mxu0 %v560
        %628 = vmatpush1.msra.mxu0 %v559
        %629 = vmatprep.subr.mxu0 %v562
        %630 = vmatpush1.msra.mxu0 %v561
        %631 = vmatprep.subr.mxu0 %v564
        %632 = vmatpush1.msra.mxu0 %v563
        %633 = vmatprep.subr.mxu0 %v566
        %634 = vmatpush1.msra.mxu0 %v565
        %635 = vmatprep.subr.mxu0 %v568
        %636 = vmatpush1.msra.mxu0 %v567
        %637 = vmatprep.subr.mxu0 %v570
        %638 = vmatpush1.msra.mxu0 %v569
        %639 = vmatprep.subr.mxu0 %v572
        %640 = vmatpush1.msra.mxu0 %v571
        %641 = vmatprep.subr.mxu0 %v574
        %642 = vmatpush1.msra.mxu0 %v573
        %643 = vmatprep.subr.mxu0 %v576
        %644 = vmatpush1.msra.mxu0 %v575
        %645 = vmatprep.mubr.f32.mxu0 %v579
        %646 = vmatmul.mubr.f32.gmra.mrb[0].mxu0 %v373
        %v647 = vpop.f32.mrb[0].mxu0
        %v648 = vadd.f32 0.0, %v647
        %v649 = vpop.f32.mrb[0].mxu0
        %v650 = vadd.f32 0.0, %v649
        %651 = vdwg.mxu0
        %v654 = vcombine.low %v648, %v650
        %v656 = vadd.f32 %v577, %v654
        %657 = vst [vmem:[#allocation2] sm:$0x77] %v656
      $region37: #{temporal_loss_forward.1} parent=31 // loop_footer
        %s366 = sadd.s32 %s364, 1
      $region38: #{temporal_loss_forward.1} parent=31 // loop_footer_branch
        %363 = sbr.rel target = $region34
      $region39: #{temporal_loss_forward.1} parent=31 // loop_exit
        _
      %v658 = vld [vmem:[#allocation2] sm:$0x77]
      %659 = vst [vmem:[%s311] sm:$0x77] %v658
      %v660 = vlaneseq
      %v661 = vand.u32 %v660, 127
      %v662 = vadd.s32 %v661, 128
      %s663 = smul.u32 %s33, 256
      %v664 = vstv %s663
      %v665 = vadd.s32 %v661, %v664
      %v666 = vadd.s32 %v662, %v664
      %vm667 = vcmp.lt.s32.totalorder %v665, 256
      %vm668 = vcmp.lt.s32.totalorder %v666, 256
      %v669 = vsel %vm667, 1, 0
      %v670 = vsel %vm668, 1, 0
      %v671 = vcvt.s32.f32 %v669
      %v672 = vcvt.s32.f32 %v670
      %v673 = vld [vmem:[%s301] sm:$0x77]
      %v674 = vsub.f32 %v658, %v673
      %v675 = vand.u32 2147483647, %v674
      %v678 = vcombine.low %v671, %v672
      %v680 = vmul.f32 %v675, %v678
      %v682 = vcombine.high %v680, %v680
      %vm684 = vcmask 1042432
      %v685 = vsel %vm684, %v680, 0.0
      %v686 = vsel %vm684, %v682, 0.0
      %v687 = vadd.f32 %v685, %v686
      %688 = vadd.xlane.f32.xlu0 %v687
      %v689 = vpop.xlane.xlu0 %688
      %v690 = vrot.slane %v689, 4
      %v691 = vadd.f32 %v689, %v690
      %v692 = vrot.slane %v691, 2
      %v693 = vadd.f32 %v691, %v692
      %v694 = vrot.slane %v693, 1
      %v695 = vadd.f32 %v693, %v694
      %s696 = vtos %v695
      %v697 = vstv %s696
      %vm698 = vcmask 0
      %699 = vst.msk [vmem:[%s318] sm:$0x1] %vm698, %v697
      %s700 = smul.u32 2, %s33
      %p701 = scmp.lt.s32.totalorder %s32, 1
      %s702 = scalar_select %p701, %s32, 1
      %p703 = scmp.lt.s32.totalorder %s700, 1
      %s704 = scalar_select %p703, %s700, 1
      %s705 = smul.addr %s702, 2
      %s706 = sadd.s32 %s704, %s705
      %s707 = smul.addr %s706, 4
      %s708 = scalar_lea.vmem %s5, %s707
      %p709 = scmp.lt.s32.totalorder %s32, 1
      %s710 = scalar_select %p709, %s32, 1
      %p711 = scmp.lt.s32.totalorder %s33, 0
      %s712 = scalar_select %p711, %s33, 0
      %s713 = sadd.s32 %s712, %s710
      %s714 = scalar_lea.vmem %s6, %s713
      // Predicated region
      $region40: #{temporal_loss_forward.1} parent=31 // pred_check
        %p715 = pneg %p142
      $region41: #{temporal_loss_forward.1} parent=31 // pred_check_branch
        %717 = sbr.rel (%p715) target = $region43
      $region42: #{temporal_loss_forward.1} parent=31 // pred_region
        %s718 = smul.u32 2, %s33
      $region43: #{temporal_loss_forward.1} parent=31 // pred_fallthru
        _
      // Predicated region
      $region44: #{temporal_loss_forward.1} parent=31 // pred_check
        %p719 = pneg %p170
      $region45: #{temporal_loss_forward.1} parent=31 // pred_check_branch
        %721 = sbr.rel (%p719) target = $region47
      $region46: #{temporal_loss_forward.1} parent=31 // pred_region
        _
      $region47: #{temporal_loss_forward.1} parent=31 // pred_fallthru
        _
    $region32: #{temporal_loss_forward.1} parent=5 // pred_fallthru
      _
    %p722 = scmp.le.s32.totalorder 2, %s23
    // Predicated region
    $region48: #{temporal_loss_forward.1} parent=5 // pred_check
      %p723 = pneg %p722
    $region49: #{temporal_loss_forward.1} parent=5 // pred_check_branch
      %725 = sbr.rel (%p723) target = $region51
    $region50: #{temporal_loss_forward.1} parent=5 // pred_region
      %s726 = ssub.s32 %s23, 2
      // Predicated region
      $region52: #{temporal_loss_forward.1} parent=50 // pred_check
        %p727 = pneg %p148
      $region53: #{temporal_loss_forward.1} parent=50 // pred_check_branch
        %729 = sbr.rel (%p727) target = $region55
      $region54: #{temporal_loss_forward.1} parent=50 // pred_region
        %s730 = smul.u32 2, %s35
        %p731 = scmp.lt.s32.totalorder %s34, 1
        %s732 = scalar_select %p731, %s34, 1
        %p733 = scmp.lt.s32.totalorder %s730, 1
        %s734 = scalar_select %p733, %s730, 1
        %s735 = smul.addr %s732, 2
        %s736 = sadd.s32 %s734, %s735
        %s737 = smul.addr %s736, 4
        %s738 = scalar_lea.vmem %s5, %s737
      $region55: #{temporal_loss_forward.1} parent=50 // pred_fallthru
        _
      // Predicated region
      $region56: #{temporal_loss_forward.1} parent=50 // pred_check
        %p739 = pneg %p176
      $region57: #{temporal_loss_forward.1} parent=50 // pred_check_branch
        %741 = sbr.rel (%p739) target = $region59
      $region58: #{temporal_loss_forward.1} parent=50 // pred_region
        %p742 = scmp.lt.s32.totalorder %s34, 1
        %s743 = scalar_select %p742, %s34, 1
        %p744 = scmp.lt.s32.totalorder %s35, 0
        %s745 = scalar_select %p744, %s35, 0
        %s746 = sadd.s32 %s745, %s743
        %s747 = scalar_lea.vmem %s6, %s746
      $region59: #{temporal_loss_forward.1} parent=50 // pred_fallthru
        _
    $region51: #{temporal_loss_forward.1} parent=5 // pred_fallthru
      _
  $region6: #{temporal_loss_forward.1} parent=0 // loop_footer
    %s27 = sadd.s32 1, %s23
  $region7: #{temporal_loss_forward.1} parent=0 // loop_footer_branch
    %22 = sbr.rel target = $region3
  $region8: #{temporal_loss_forward.1} parent=0 // loop_exit
    _

</llo_original>
